<compile_context>
chip_gen: v6e
topology: v6e:2x2x1
jax: 0.10.0
libtpu: 0.0.40
codegen_flags: <defaults>
</compile_context>

<pallas_src>
import functools

import jax
import jax.numpy as jnp
from jax import lax
from jax.experimental import pallas as pl
from jax.experimental.pallas import tpu as pltpu

LPAD = 128  # lane-aligned zero extension on each side of the flat image


def _channel_branch_kernel(x_ref, dwb_ref, pwb_ref, o_ref, xe_ref, *, W, HW, GC):
    """One batch-group per grid step; batch*channels on sublanes, space on lanes.

    x_ref  : (1, GC, HW)          input slab (GC = G*C rows, each a flat image)
    dwb_ref: (GC, 16)             cols 0..8: depthwise 3x3 taps (BN1 scale folded),
                                  col 9: folded BN1 offset (+ conv1 bias)
    pwb_ref: (GC2, GC+1)          cols 0..GC-1: block-diagonal 1x1 weights
                                  (BN2 scale folded), col GC: folded BN2 offset
    o_ref  : (1, GC2, HW)         output slab (lane-dense last dim)
    xe_ref : (GC, LPAD+HW+LPAD)   VMEM scratch: zero-extended flat images
    """
    # --- zero the halo regions only on the first grid step (scratch persists,
    #     interior is fully overwritten every step). Aligned, unmasked stores.
    @pl.when(pl.program_id(0) == 0)
    def _():
        zp = jnp.zeros((GC, LPAD), jnp.float32)
        xe_ref[:, 0:LPAD] = zp
        xe_ref[:, LPAD + HW:LPAD + HW + LPAD] = zp

    # Interior copy: lane offset 128 -> aligned, unmasked store.
    xe_ref[:, LPAD:LPAD + HW] = x_ref[0]

    # Column-validity masks (positional only): horizontal taps must not read
    # across row ends of the flattened image.
    col = lax.broadcasted_iota(jnp.int32, (1, HW), 1) % W
    left_ok = col >= 1           # valid output positions for a dj = -1 tap
    right_ok = col <= W - 2      # valid output positions for a dj = +1 tap

    def wtap(di, dj):
        # Weighted tap: constant-offset read of the extended image times the
        # per-row (per batch*channel) folded weight (a lane slice of a tile
        # that is already resident in VMEM).
        start = LPAD + di * W + dj
        k = 3 * (di + 1) + (dj + 1)
        return xe_ref[:, start:start + HW] * dwb_ref[:, k:k + 1]

    # Depthwise 3x3: group taps by horizontal offset so each side needs only
    # ONE select (the mask depends only on the output column).
    acc_mid = wtap(-1, 0) + wtap(0, 0) + wtap(1, 0)
    acc_l = wtap(-1, -1) + wtap(0, -1) + wtap(1, -1)
    acc_r = wtap(-1, 1) + wtap(0, 1) + wtap(1, 1)
    acc = acc_mid + jnp.where(left_ok, acc_l, 0.0) + jnp.where(right_ok, acc_r, 0.0)

    # BN1 (scale already folded into the taps) + ReLU.
    x1 = jnp.maximum(acc + dwb_ref[:, 9:10], 0.0)            # (GC, HW)

    # 1x1 conv over the whole batch group as ONE MXU matmul with a
    # block-diagonal weight: (GC2, GC) @ (GC, HW) -> (GC2, HW).
    # (Contraction dim 8 is padded by the MXU; latency-hidden at this size.)
    pw = pwb_ref[:, 0:GC]
    b2 = pwb_ref[:, GC:GC + 1]
    y = jnp.dot(pw, x1, preferred_element_type=jnp.float32)

    # BN2 (scale folded) + ReLU; lane-dense store (last dim = HW, mult. of 128).
    o_ref[0] = jnp.maximum(y + b2, 0.0)


@jax.jit
def channel_branch_pallas(x_nchw, dwb, pwb):
    """x_nchw: (N, C, H, W) f32.  dwb: (G*C, 16).  pwb: (G*C2, G*C+1).

    Returns (N, C2, H, W) f32, where C2 = channel // rate.
    """
    N, C, H, W = x_nchw.shape
    HW = H * W
    GC = dwb.shape[0]
    G = GC // C
    GC2 = pwb.shape[0]
    C2 = GC2 // G
    assert N % G == 0, "batch must be divisible by the sublane group size"
    assert W + 1 <= LPAD and HW % 128 == 0
    NG = N // G

    # Free reshapes inside jit: rows of the slab are (batch, channel) images.
    x_g = x_nchw.reshape(NG, GC, HW)

    kernel = functools.partial(_channel_branch_kernel, W=W, HW=HW, GC=GC)
    out = pl.pallas_call(
        kernel,
        out_shape=jax.ShapeDtypeStruct((NG, GC2, HW), jnp.float32),
        grid_spec=pltpu.PrefetchScalarGridSpec(
            num_scalar_prefetch=0,
            grid=(NG,),
            in_specs=[
                pl.BlockSpec((1, GC, HW), lambda g: (g, 0, 0)),
                pl.BlockSpec((GC, 16), lambda g: (0, 0)),
                pl.BlockSpec((GC2, GC + 1), lambda g: (0, 0)),
            ],
            out_specs=pl.BlockSpec((1, GC2, HW), lambda g: (g, 0, 0)),
            scratch_shapes=[pltpu.VMEM((GC, 2 * LPAD + HW), jnp.float32)],
        ),
        compiler_params=pltpu.CompilerParams(
            dimension_semantics=("parallel",)),
    )(x_g, dwb, pwb)
    return out.reshape(N, C2, H, W)


# ----------------------------------------------------------------------------
# Parameters, folding/packing, and pure-JAX reference (unfused, raw params).
# ----------------------------------------------------------------------------
def make_raw_params(key, channel, rate):
    """Deterministic synthetic parameters matching the nn.Module shapes."""
    c2 = channel // rate
    keys = jax.random.split(key, 10)
    dw_w = 0.1 * jax.random.normal(keys[0], (3, 3, channel), jnp.float32)
    dw_b = 0.1 * jax.random.normal(keys[1], (channel,), jnp.float32)
    g1 = 1.0 + 0.1 * jax.random.normal(keys[2], (channel,), jnp.float32)
    be1 = 0.1 * jax.random.normal(keys[3], (channel,), jnp.float32)
    m1 = 0.1 * jax.random.normal(keys[4], (channel,), jnp.float32)
    v1 = 1.0 + 0.1 * jax.random.uniform(keys[5], (channel,), jnp.float32)
    pw_w = 0.1 * jax.random.normal(keys[6], (c2, channel), jnp.float32)
    pw_b = 0.1 * jax.random.normal(keys[7], (c2,), jnp.float32)
    g2 = 1.0 + 0.1 * jax.random.normal(keys[8], (c2,), jnp.float32)
    be2 = 0.1 * jax.random.normal(keys[9], (c2,), jnp.float32)
    m2 = jnp.zeros((c2,), jnp.float32)
    v2 = jnp.ones((c2,), jnp.float32)
    return dict(dw_w=dw_w, dw_b=dw_b, g1=g1, be1=be1, m1=m1, v1=v1,
                pw_w=pw_w, pw_b=pw_b, g2=g2, be2=be2, m2=m2, v2=v2)


def fold_and_pack_params(p, G, eps=1e-5):
    """Fold BN into conv weights/biases and pack into two small VMEM tiles.

    dwb: (G*C, 16)       cols 0..8 = per-row 3x3 taps, col 9 = folded bias.
    pwb: (G*C2, G*C+1)   cols 0..G*C-1 = block-diagonal 1x1 weights,
                         col G*C = folded bias.
    """
    C = p["dw_w"].shape[-1]
    s1 = p["g1"] / jnp.sqrt(p["v1"] + eps)                        # (C,)
    w9 = (p["dw_w"] * s1).reshape(9, C).T                         # (C, 9)
    b1 = (p["be1"] + s1 * (p["dw_b"] - p["m1"]))[:, None]         # (C, 1)
    dwb_c = jnp.concatenate([w9, b1, jnp.zeros((C, 6), jnp.float32)], axis=1)
    dwb = jnp.tile(dwb_c, (G, 1))                                 # (G*C, 16)

    s2 = p["g2"] / jnp.sqrt(p["v2"] + eps)                        # (C2,)
    pw_f = p["pw_w"] * s2[:, None]                                # (C2, C)
    b2 = (p["be2"] + s2 * (p["pw_b"] - p["m2"]))                  # (C2,)
    pw_bd = jnp.kron(jnp.eye(G, dtype=jnp.float32), pw_f)         # (G*C2, G*C)
    b2_bd = jnp.tile(b2, (G,))[:, None]                           # (G*C2, 1)
    pwb = jnp.concatenate([pw_bd, b2_bd], axis=1)                 # (G*C2, G*C+1)
    return dwb, pwb


def channel_branch_reference(x, p, eps=1e-5):
    """Unfused reference: conv1 -> bn1 -> relu -> conv2 -> bn2 -> relu (NCHW)."""
    N, C, H, W = x.shape
    xp = jnp.pad(x, ((0, 0), (0, 0), (1, 1), (1, 1)))
    acc = jnp.zeros((N, C, H, W), jnp.float32)
    for a in range(3):
        for b in range(3):
            acc = acc + xp[:, :, a:a + H, b:b + W] * p["dw_w"][a, b][None, :, None, None]
    acc = acc + p["dw_b"][None, :, None, None]
    s1 = (p["g1"] / jnp.sqrt(p["v1"] + eps))[None, :, None, None]
    x1 = (acc - p["m1"][None, :, None, None]) * s1 + p["be1"][None, :, None, None]
    x1 = jnp.maximum(x1, 0.0)
    x2 = jnp.einsum("nchw,dc->ndhw", x1, p["pw_w"]) + p["pw_b"][None, :, None, None]
    s2 = (p["g2"] / jnp.sqrt(p["v2"] + eps))[None, :, None, None]
    x2 = (x2 - p["m2"][None, :, None, None]) * s2 + p["be2"][None, :, None, None]
    return jnp.maximum(x2, 0.0)


if __name__ == "__main__":
    # Small shapes consistent with the module.
    N, C, H, W = 2, 4, 16, 16
    rate = 2

    key = jax.random.PRNGKey(0)
    kx, kp = jax.random.split(key)
    x = jax.random.normal(kx, (N, C, H, W), jnp.float32)   # NCHW, module-native

    raw = make_raw_params(kp, C, rate)

    # Batch-group size: fill all 8 sublanes per grid step (here: whole batch
    # in one step; for larger batches this yields >= 2 parallel steps on v7x).
    G = max(1, min(N, 8 // C))
    while N % G:
        G -= 1
    dwb, pwb = fold_and_pack_params(raw, G)

    out = channel_branch_pallas(x, dwb, pwb)
    out = jax.block_until_ready(out)

    ref = channel_branch_reference(x, raw)
    assert out.shape == (N, C // rate, H, W)
    assert jnp.allclose(out, ref, atol=1e-4, rtol=1e-4), "mismatch vs reference"

    print("KERNEL_OK")
</pallas_src>

<mosaic_0001>
module attributes {stable_mosaic.version = 11 : i64} {
  func.func @_channel_branch_kernel(%arg0: i32, %arg1: memref<1x8x256xf32, #tpu.memory_space<vmem>>, %arg2: memref<8x16xf32, #tpu.memory_space<vmem>>, %arg3: memref<4x9xf32, #tpu.memory_space<vmem>>, %arg4: memref<1x4x256xf32, #tpu.memory_space<vmem>>, %arg5: memref<8x512xf32, #tpu.memory_space<vmem>>) attributes {dimension_semantics = [#tpu.dimension_semantics<parallel>], iteration_bounds = array<i64: 1>, scalar_prefetch = 0 : i64, scratch_operands = 1 : i64, tpu.core_type = #tpu.core_type<tc>, window_params = [{transform_indices = @transform_0, window_bounds = array<i64: 1, 8, 256>}, {pipeline_mode = #tpu.pipeline_mode<synchronous>, transform_indices = @transform_1, window_bounds = array<i64: 8, 16>}, {pipeline_mode = #tpu.pipeline_mode<synchronous>, transform_indices = @transform_2, window_bounds = array<i64: 4, 9>}, {transform_indices = @transform_3, window_bounds = array<i64: 1, 4, 256>}]} {
    %c0_i32 = arith.constant 0 : i32
    %0 = arith.cmpi eq, %arg0, %c0_i32 : i32
    %1 = arith.extui %0 : i1 to i32
    %c0_i32_0 = arith.constant 0 : i32
    %2 = arith.cmpi ne, %1, %c0_i32_0 : i32
    scf.if %2 {
      %cst_41 = arith.constant 0.000000e+00 : f32
      %94 = vector.broadcast %cst_41 : f32 to vector<8x128xf32>
      %c0_42 = arith.constant 0 : index
      %c0_43 = arith.constant 0 : index
      %95 = vector.load %arg5[%c0_42, %c0_43] : memref<8x512xf32, #tpu.memory_space<vmem>>, vector<8x128xf32>
      tpu.vector_store %arg5[%c0_42, %c0_43], %94 {strides = array<i32>} : memref<8x512xf32, #tpu.memory_space<vmem>>, vector<8x128xf32>,
      %c0_44 = arith.constant 0 : index
      %c384 = arith.constant 384 : index
      %96 = vector.load %arg5[%c0_44, %c384] : memref<8x512xf32, #tpu.memory_space<vmem>>, vector<8x128xf32>
      tpu.vector_store %arg5[%c0_44, %c384], %94 {strides = array<i32>} : memref<8x512xf32, #tpu.memory_space<vmem>>, vector<8x128xf32>,
    } else {
    }
    %c0 = arith.constant 0 : index
    %c0_1 = arith.constant 0 : index
    %c0_2 = arith.constant 0 : index
    %3 = vector.load %arg1[%c0, %c0_1, %c0_2] : memref<1x8x256xf32, #tpu.memory_space<vmem>>, vector<1x8x256xf32>
    %4 = vector.shape_cast %3 : vector<1x8x256xf32> to vector<8x256xf32>
    %c0_3 = arith.constant 0 : index
    %c128 = arith.constant 128 : index
    %5 = vector.load %arg5[%c0_3, %c128] : memref<8x512xf32, #tpu.memory_space<vmem>>, vector<8x256xf32>
    tpu.vector_store %arg5[%c0_3, %c128], %4 {strides = array<i32>} : memref<8x512xf32, #tpu.memory_space<vmem>>, vector<8x256xf32>,
    %6 = tpu.iota {dimensions = array<i32: 1>} : vector<1x256xi32>
    %c16_i32 = arith.constant 16 : i32
    %c0_i32_4 = arith.constant 0 : i32
    %7 = arith.cmpi eq, %c16_i32, %c0_i32_4 : i32
    %c1_i32 = arith.constant 1 : i32
    %8 = arith.select %7, %c1_i32, %c16_i32 : i32
    %9 = vector.broadcast %8 : i32 to vector<1x256xi32>
    %10 = arith.remsi %6, %9 : vector<1x256xi32>
    %c0_i32_5 = arith.constant 0 : i32
    %11 = vector.broadcast %c0_i32_5 : i32 to vector<1x256xi32>
    %12 = arith.cmpi ne, %10, %11 : vector<1x256xi32>
    %c0_i32_6 = arith.constant 0 : i32
    %13 = vector.broadcast %c0_i32_6 : i32 to vector<1x256xi32>
    %14 = arith.cmpi slt, %10, %13 : vector<1x256xi32>
    %c0_i32_7 = arith.constant 0 : i32
    %15 = arith.cmpi slt, %8, %c0_i32_7 : i32
    %16 = vector.broadcast %15 : i1 to vector<1x256xi1>
    %17 = vector.broadcast %16 : vector<1x256xi1> to vector<1x256xi1>
    %18 = arith.xori %14, %17 : vector<1x256xi1>
    %19 = arith.andi %18, %12 : vector<1x256xi1>
    %20 = vector.broadcast %8 : i32 to vector<1x256xi32>
    %21 = arith.addi %10, %20 : vector<1x256xi32>
    %22 = arith.select %19, %21, %10 : vector<1x256xi1>, vector<1x256xi32>
    %c1_i32_8 = arith.constant 1 : i32
    %23 = vector.broadcast %c1_i32_8 : i32 to vector<1x256xi32>
    %24 = arith.cmpi sge, %22, %23 : vector<1x256xi32>
    %c14_i32 = arith.constant 14 : i32
    %25 = vector.broadcast %c14_i32 : i32 to vector<1x256xi32>
    %26 = arith.cmpi sle, %22, %25 : vector<1x256xi32>
    %c0_9 = arith.constant 0 : index
    %c112 = arith.constant 112 : index
    %27 = vector.load %arg5[%c0_9, %c112] : memref<8x512xf32, #tpu.memory_space<vmem>>, vector<8x256xf32>
    %c0_10 = arith.constant 0 : index
    %c1 = arith.constant 1 : index
    %28 = vector.load %arg2[%c0_10, %c1] : memref<8x16xf32, #tpu.memory_space<vmem>>, vector<8x1xf32>
    %29 = vector.broadcast %28 : vector<8x1xf32> to vector<8x256xf32>
    %30 = arith.mulf %27, %29 : vector<8x256xf32>
    %c0_11 = arith.constant 0 : index
    %c128_12 = arith.constant 128 : index
    %31 = vector.load %arg5[%c0_11, %c128_12] : memref<8x512xf32, #tpu.memory_space<vmem>>, vector<8x256xf32>
    %c0_13 = arith.constant 0 : index
    %c4 = arith.constant 4 : index
    %32 = vector.load %arg2[%c0_13, %c4] : memref<8x16xf32, #tpu.memory_space<vmem>>, vector<8x1xf32>
    %33 = vector.broadcast %32 : vector<8x1xf32> to vector<8x256xf32>
    %34 = arith.mulf %31, %33 : vector<8x256xf32>
    %35 = arith.addf %30, %34 : vector<8x256xf32>
    %c0_14 = arith.constant 0 : index
    %c144 = arith.constant 144 : index
    %36 = vector.load %arg5[%c0_14, %c144] : memref<8x512xf32, #tpu.memory_space<vmem>>, vector<8x256xf32>
    %c0_15 = arith.constant 0 : index
    %c7 = arith.constant 7 : index
    %37 = vector.load %arg2[%c0_15, %c7] : memref<8x16xf32, #tpu.memory_space<vmem>>, vector<8x1xf32>
    %38 = vector.broadcast %37 : vector<8x1xf32> to vector<8x256xf32>
    %39 = arith.mulf %36, %38 : vector<8x256xf32>
    %40 = arith.addf %35, %39 : vector<8x256xf32>
    %c0_16 = arith.constant 0 : index
    %c111 = arith.constant 111 : index
    %41 = vector.load %arg5[%c0_16, %c111] : memref<8x512xf32, #tpu.memory_space<vmem>>, vector<8x256xf32>
    %c0_17 = arith.constant 0 : index
    %c0_18 = arith.constant 0 : index
    %42 = vector.load %arg2[%c0_17, %c0_18] : memref<8x16xf32, #tpu.memory_space<vmem>>, vector<8x1xf32>
    %43 = vector.broadcast %42 : vector<8x1xf32> to vector<8x256xf32>
    %44 = arith.mulf %41, %43 : vector<8x256xf32>
    %c0_19 = arith.constant 0 : index
    %c127 = arith.constant 127 : index
    %45 = vector.load %arg5[%c0_19, %c127] : memref<8x512xf32, #tpu.memory_space<vmem>>, vector<8x256xf32>
    %c0_20 = arith.constant 0 : index
    %c3 = arith.constant 3 : index
    %46 = vector.load %arg2[%c0_20, %c3] : memref<8x16xf32, #tpu.memory_space<vmem>>, vector<8x1xf32>
    %47 = vector.broadcast %46 : vector<8x1xf32> to vector<8x256xf32>
    %48 = arith.mulf %45, %47 : vector<8x256xf32>
    %49 = arith.addf %44, %48 : vector<8x256xf32>
    %c0_21 = arith.constant 0 : index
    %c143 = arith.constant 143 : index
    %50 = vector.load %arg5[%c0_21, %c143] : memref<8x512xf32, #tpu.memory_space<vmem>>, vector<8x256xf32>
    %c0_22 = arith.constant 0 : index
    %c6 = arith.constant 6 : index
    %51 = vector.load %arg2[%c0_22, %c6] : memref<8x16xf32, #tpu.memory_space<vmem>>, vector<8x1xf32>
    %52 = vector.broadcast %51 : vector<8x1xf32> to vector<8x256xf32>
    %53 = arith.mulf %50, %52 : vector<8x256xf32>
    %54 = arith.addf %49, %53 : vector<8x256xf32>
    %c0_23 = arith.constant 0 : index
    %c113 = arith.constant 113 : index
    %55 = vector.load %arg5[%c0_23, %c113] : memref<8x512xf32, #tpu.memory_space<vmem>>, vector<8x256xf32>
    %c0_24 = arith.constant 0 : index
    %c2 = arith.constant 2 : index
    %56 = vector.load %arg2[%c0_24, %c2] : memref<8x16xf32, #tpu.memory_space<vmem>>, vector<8x1xf32>
    %57 = vector.broadcast %56 : vector<8x1xf32> to vector<8x256xf32>
    %58 = arith.mulf %55, %57 : vector<8x256xf32>
    %c0_25 = arith.constant 0 : index
    %c129 = arith.constant 129 : index
    %59 = vector.load %arg5[%c0_25, %c129] : memref<8x512xf32, #tpu.memory_space<vmem>>, vector<8x256xf32>
    %c0_26 = arith.constant 0 : index
    %c5 = arith.constant 5 : index
    %60 = vector.load %arg2[%c0_26, %c5] : memref<8x16xf32, #tpu.memory_space<vmem>>, vector<8x1xf32>
    %61 = vector.broadcast %60 : vector<8x1xf32> to vector<8x256xf32>
    %62 = arith.mulf %59, %61 : vector<8x256xf32>
    %63 = arith.addf %58, %62 : vector<8x256xf32>
    %c0_27 = arith.constant 0 : index
    %c145 = arith.constant 145 : index
    %64 = vector.load %arg5[%c0_27, %c145] : memref<8x512xf32, #tpu.memory_space<vmem>>, vector<8x256xf32>
    %c0_28 = arith.constant 0 : index
    %c8 = arith.constant 8 : index
    %65 = vector.load %arg2[%c0_28, %c8] : memref<8x16xf32, #tpu.memory_space<vmem>>, vector<8x1xf32>
    %66 = vector.broadcast %65 : vector<8x1xf32> to vector<8x256xf32>
    %67 = arith.mulf %64, %66 : vector<8x256xf32>
    %68 = arith.addf %63, %67 : vector<8x256xf32>
    %cst = arith.constant 0.000000e+00 : f32
    %69 = vector.shape_cast %24 : vector<1x256xi1> to vector<1x256xi1>
    %70 = vector.broadcast %69 : vector<1x256xi1> to vector<8x256xi1>
    %71 = vector.broadcast %cst : f32 to vector<8x256xf32>
    %72 = arith.select %70, %54, %71 : vector<8x256xi1>, vector<8x256xf32>
    %73 = arith.addf %40, %72 : vector<8x256xf32>
    %cst_29 = arith.constant 0.000000e+00 : f32
    %74 = vector.shape_cast %26 : vector<1x256xi1> to vector<1x256xi1>
    %75 = vector.broadcast %74 : vector<1x256xi1> to vector<8x256xi1>
    %76 = vector.broadcast %cst_29 : f32 to vector<8x256xf32>
    %77 = arith.select %75, %68, %76 : vector<8x256xi1>, vector<8x256xf32>
    %78 = arith.addf %73, %77 : vector<8x256xf32>
    %c0_30 = arith.constant 0 : index
    %c9 = arith.constant 9 : index
    %79 = vector.load %arg2[%c0_30, %c9] : memref<8x16xf32, #tpu.memory_space<vmem>>, vector<8x1xf32>
    %80 = vector.broadcast %79 : vector<8x1xf32> to vector<8x256xf32>
    %81 = arith.addf %78, %80 : vector<8x256xf32>
    %cst_31 = arith.constant 0.000000e+00 : f32
    %82 = vector.broadcast %cst_31 : f32 to vector<8x256xf32>
    %83 = arith.maximumf %81, %82 : vector<8x256xf32>
    %c0_32 = arith.constant 0 : index
    %c0_33 = arith.constant 0 : index
    %84 = vector.load %arg3[%c0_32, %c0_33] : memref<4x9xf32, #tpu.memory_space<vmem>>, vector<4x8xf32>
    %c0_34 = arith.constant 0 : index
    %c8_35 = arith.constant 8 : index
    %85 = vector.load %arg3[%c0_34, %c8_35] : memref<4x9xf32, #tpu.memory_space<vmem>>, vector<4x1xf32>
    %cst_36 = arith.constant dense<0.000000e+00> : vector<4x256xf32>
    %86 = tpu.matmul %84, %83, %cst_36 {dimension_numbers = #tpu.dot_dimension_numbers<[1], [0], [0], [1], [0, 0, 1, 1], [], []>} : vector<4x8xf32>, vector<8x256xf32>, vector<4x256xf32> -> vector<4x256xf32>
    %87 = vector.broadcast %85 : vector<4x1xf32> to vector<4x256xf32>
    %88 = arith.addf %86, %87 : vector<4x256xf32>
    %cst_37 = arith.constant 0.000000e+00 : f32
    %89 = vector.broadcast %cst_37 : f32 to vector<4x256xf32>
    %90 = arith.maximumf %88, %89 : vector<4x256xf32>
    %c0_38 = arith.constant 0 : index
    %c0_39 = arith.constant 0 : index
    %c0_40 = arith.constant 0 : index
    %91 = vector.load %arg4[%c0_38, %c0_39, %c0_40] : memref<1x4x256xf32, #tpu.memory_space<vmem>>, vector<1x4x256xf32>
    %92 = vector.shape_cast %91 : vector<1x4x256xf32> to vector<4x256xf32>
    %93 = vector.shape_cast %90 : vector<4x256xf32> to vector<1x4x256xf32>
    tpu.vector_store %arg4[%c0_38, %c0_39, %c0_40], %93 {strides = array<i32>} : memref<1x4x256xf32, #tpu.memory_space<vmem>>, vector<1x4x256xf32>,
    return
  }
  func.func @transform_0(%arg0: i32) -> (i32, i32, i32) {
    %c0_i32 = arith.constant 0 : i32
    %c0_i32_0 = arith.constant 0 : i32
    %c0_i32_1 = arith.constant 0 : i32
    return %arg0, %c0_i32, %c0_i32_0 : i32, i32, i32
  }
  func.func @transform_1(%arg0: i32) -> (i32, i32) {
    %c0_i32 = arith.constant 0 : i32
    %c0_i32_0 = arith.constant 0 : i32
    %c0_i32_1 = arith.constant 0 : i32
    return %c0_i32, %c0_i32_0 : i32, i32
  }
  func.func @transform_2(%arg0: i32) -> (i32, i32) {
    %c0_i32 = arith.constant 0 : i32
    %c0_i32_0 = arith.constant 0 : i32
    %c0_i32_1 = arith.constant 0 : i32
    return %c0_i32, %c0_i32_0 : i32, i32
  }
  func.func @transform_3(%arg0: i32) -> (i32, i32, i32) {
    %c0_i32 = arith.constant 0 : i32
    %c0_i32_0 = arith.constant 0 : i32
    %c0_i32_1 = arith.constant 0 : i32
    return %arg0, %c0_i32, %c0_i32_0 : i32, i32, i32
  }
}

</mosaic_0001>

<llo_original>
// kernel: channel_branch_pallas.1
$region0: #{channel_branch_pallas.1}
  #allocation0 [shape = 'u32[]', space=smem, size = 0x4, offset = 0x4, fixed_abs, tag = 'smem constant byte address 0x4 - core index']
  #allocation1 [shape = 'u32[144,128]{1,0:T(1,128)}', space=vmem, size = 0x12000, scoped, tag = 'internal scratch']
  #allocation2 [shape = 'f32[8,512]{1,0:T(8,128)}', space=vmem, size = 0x4000, scoped, tag = 'scratch operand']
  %s0 = inlined_call_operand.vmem [shape: f32[1,8,256], index: 0, kind: input, shape index: {}]
  %s1 = inlined_call_operand.vmem [shape: f32[8,16], index: 1, kind: input, shape index: {}]
  %s2 = inlined_call_operand.vmem [shape: f32[4,9], index: 2, kind: input, shape index: {}]
  %s3 = inlined_call_operand.vmem [shape: f32[1,4,256], index: 3, kind: output, shape index: {}]
  %s4 = sld [smem:[#allocation0]]
  $region26: #{channel_branch_pallas.1} parent=0
    _
  %s6 = ssub.s32 1, %s4
  %s7 = scalar_select 0, %s6, %s4
  // Predicated region
  $region2: #{channel_branch_pallas.1} parent=0 // pred_check
    _
  $region3: #{channel_branch_pallas.1} parent=0 // pred_check_branch
    %9 = sbr.rel (0) target = $region5
  $region4: #{channel_branch_pallas.1} parent=0 // pred_region
    _
  $region5: #{channel_branch_pallas.1} parent=0 // pred_fallthru
    _
  // Predicated region
  $region6: #{channel_branch_pallas.1} parent=0 // pred_check
    _
  $region7: #{channel_branch_pallas.1} parent=0 // pred_check_branch
    %11 = sbr.rel (0) target = $region9
  $region8: #{channel_branch_pallas.1} parent=0 // pred_region
    _
  $region9: #{channel_branch_pallas.1} parent=0 // pred_fallthru
    _
  // Predicated region
  $region10: #{channel_branch_pallas.1} parent=0 // pred_check
    _
  $region11: #{channel_branch_pallas.1} parent=0 // pred_check_branch
    %13 = sbr.rel (0) target = $region13
  $region12: #{channel_branch_pallas.1} parent=0 // pred_region
    _
  $region13: #{channel_branch_pallas.1} parent=0 // pred_fallthru
    _
  %p14 = scmp.eq.s32.totalorder 0, 0
  // Predicated region
  $region14: #{channel_branch_pallas.1} parent=0 // pred_check
    %p15 = pneg %p14
  $region15: #{channel_branch_pallas.1} parent=0 // pred_check_branch
    %17 = sbr.rel (%p15) target = $region17
  $region16: #{channel_branch_pallas.1} parent=0 // pred_region
    %18 = vst [vmem:[#allocation2] sm:$0xff] 0.0
    %19 = vst [vmem:[#allocation2 + $0x18] sm:$0xff] 0.0
  $region17: #{channel_branch_pallas.1} parent=0 // pred_fallthru
    _
  %v20 = vld [vmem:[%s0] sm:$0xff]
  %v21 = vld [vmem:[%s0 + $0x8] sm:$0xff]
  %22 = vst [vmem:[#allocation2 + $0x8] sm:$0xff] %v20
  %23 = vst [vmem:[#allocation2 + $0x10] sm:$0xff] %v21
  %v24 = vlaneseq
  %v25 = vand.u32 %v24, 127
  %v26 = vadd.s32 %v25, 128
  %vm27 = vcmp.lt.s32.totalorder %v25, 0
  %v28 = vsub.s32 0, %v25
  %v29 = vsel %vm27, %v28, %v25
  %v30 = vshrl.u32 %v29, 4
  %v31 = vand.u32 %v29, 15
  %v32 = vsub.s32 0, %v31
  %v33 = vsel %vm27, %v32, %v31
  %vm34 = vcmp.lt.s32.totalorder %v26, 0
  %v35 = vsub.s32 0, %v26
  %v36 = vsel %vm34, %v35, %v26
  %v37 = vshrl.u32 %v36, 4
  %v38 = vand.u32 %v36, 15
  %v39 = vsub.s32 0, %v38
  %v40 = vsel %vm34, %v39, %v38
  %vm41 = vcmp.ne.s32.totalorder %v33, 0
  %vm42 = vcmp.ne.s32.totalorder %v40, 0
  %vm43 = vcmp.lt.s32.totalorder %v33, 0
  %vm44 = vcmp.lt.s32.totalorder %v40, 0
  %vm45 = vmand %vm43, %vm41
  %vm46 = vmand %vm44, %vm42
  %v47 = vadd.s32 %v33, 16
  %v48 = vadd.s32 %v40, 16
  %v49 = vsel %vm45, %v47, %v33
  %v50 = vsel %vm46, %v48, %v40
  %vm51 = vcmp.ge.s32.totalorder %v49, 1
  %vm52 = vcmp.ge.s32.totalorder %v50, 1
  %vm53 = vcmp.le.s32.totalorder %v49, 14
  %vm54 = vcmp.le.s32.totalorder %v50, 14
  %v55 = vld [vmem:[#allocation2] sm:$0xff]
  %v56 = vld [vmem:[#allocation2 + $0x8] sm:$0xff]
  %v57 = vld [vmem:[#allocation2 + $0x10] sm:$0xff]
  %v58 = vld [vmem:[%s1] sm:$0xff]
  %60 = vset.pattern.permute.xlu0 1
  %61 = vperm.xlu0 %60, %v58
  %v62 = vpop.permute.xlu0 %61
  %v64 = vmul.f32 %v55, %v62
  %v65 = vmul.f32 %v56, %v62
  %v66 = vmul.f32 %v57, %v62
  %67 = vset.pattern.permute.xlu0 4
  %68 = vperm.xlu0 %67, %v58
  %v69 = vpop.permute.xlu0 %68
  %v71 = vmul.f32 %v56, %v69
  %v72 = vmul.f32 %v57, %v69
  %75 = vrot.lane.b32.xlu0 %v71, 112
  %v76 = vpop.permute.xlu0 %75
  %77 = vrot.lane.b32.xlu0 %v72, 112
  %v78 = vpop.permute.xlu0 %77
  %vm79 = vcmask 916480
  %v80 = vsel %vm79, %v76, %v78
  %v84 = vadd.f32 %v64, %v76
  %v85 = vadd.f32 %v65, %v80
  %v86 = vadd.f32 %v66, %v78
  %v87 = vld [vmem:[#allocation2 + $0x8] sm:$0xff]
  %v88 = vld [vmem:[#allocation2 + $0x10] sm:$0xff]
  %v89 = vld [vmem:[#allocation2 + $0x18] sm:$0xff]
  %90 = vset.pattern.permute.xlu0 7
  %91 = vperm.xlu0 %90, %v58
  %v92 = vpop.permute.xlu0 %91
  %v94 = vmul.f32 %v87, %v92
  %v95 = vmul.f32 %v88, %v92
  %v96 = vmul.f32 %v89, %v92
  %100 = vrot.lane.b32.xlu0 %v94, 96
  %v101 = vpop.permute.xlu0 %100
  %102 = vrot.lane.b32.xlu0 %v95, 96
  %v103 = vpop.permute.xlu0 %102
  %104 = vrot.lane.b32.xlu0 %v96, 96
  %v105 = vpop.permute.xlu0 %104
  %vm106 = vcmask 785408
  %v107 = vsel %vm106, %v101, %v103
  %v108 = vsel %vm106, %v103, %v105
  %v112 = vadd.f32 %v84, %v101
  %v113 = vadd.f32 %v85, %v107
  %v114 = vadd.f32 %v86, %v108
  %115 = vset.pattern.permute.xlu0 0
  %116 = vperm.xlu0 %115, %v58
  %v117 = vpop.permute.xlu0 %116
  %v119 = vmul.f32 %v55, %v117
  %v120 = vmul.f32 %v56, %v117
  %v121 = vmul.f32 %v57, %v117
  %122 = vset.pattern.permute.xlu0 3
  %123 = vperm.xlu0 %122, %v58
  %v124 = vpop.permute.xlu0 %123
  %v126 = vmul.f32 %v55, %v124
  %v127 = vmul.f32 %v56, %v124
  %v128 = vmul.f32 %v57, %v124
  %132 = vrot.lane.b32.xlu0 %v126, 112
  %v133 = vpop.permute.xlu0 %132
  %134 = vrot.lane.b32.xlu0 %v127, 112
  %v135 = vpop.permute.xlu0 %134
  %136 = vrot.lane.b32.xlu0 %v128, 112
  %v137 = vpop.permute.xlu0 %136
  %v138 = vsel %vm79, %v133, %v135
  %v139 = vsel %vm79, %v135, %v137
  %v143 = vadd.f32 %v119, %v138
  %v144 = vadd.f32 %v120, %v139
  %v145 = vadd.f32 %v121, %v137
  %146 = vset.pattern.permute.xlu0 6
  %147 = vperm.xlu0 %146, %v58
  %v148 = vpop.permute.xlu0 %147
  %v150 = vmul.f32 %v87, %v148
  %v151 = vmul.f32 %v88, %v148
  %v152 = vmul.f32 %v89, %v148
  %156 = vrot.lane.b32.xlu0 %v150, 96
  %v157 = vpop.permute.xlu0 %156
  %158 = vrot.lane.b32.xlu0 %v151, 96
  %v159 = vpop.permute.xlu0 %158
  %160 = vrot.lane.b32.xlu0 %v152, 96
  %v161 = vpop.permute.xlu0 %160
  %v162 = vsel %vm106, %v157, %v159
  %v163 = vsel %vm106, %v159, %v161
  %v167 = vadd.f32 %v143, %v157
  %v168 = vadd.f32 %v144, %v162
  %v169 = vadd.f32 %v145, %v163
  %170 = vset.pattern.permute.xlu0 2
  %171 = vperm.xlu0 %170, %v58
  %v172 = vpop.permute.xlu0 %171
  %v174 = vmul.f32 %v55, %v172
  %v175 = vmul.f32 %v56, %v172
  %v176 = vmul.f32 %v57, %v172
  %177 = vset.pattern.permute.xlu0 5
  %178 = vperm.xlu0 %177, %v58
  %v179 = vpop.permute.xlu0 %178
  %v181 = vmul.f32 %v87, %v179
  %v182 = vmul.f32 %v88, %v179
  %v183 = vmul.f32 %v89, %v179
  %187 = vrot.lane.b32.xlu0 %v181, 112
  %v188 = vpop.permute.xlu0 %187
  %189 = vrot.lane.b32.xlu0 %v182, 112
  %v190 = vpop.permute.xlu0 %189
  %191 = vrot.lane.b32.xlu0 %v183, 112
  %v192 = vpop.permute.xlu0 %191
  %v193 = vsel %vm79, %v188, %v190
  %v194 = vsel %vm79, %v190, %v192
  %v198 = vadd.f32 %v174, %v188
  %v199 = vadd.f32 %v175, %v193
  %v200 = vadd.f32 %v176, %v194
  %201 = vset.pattern.permute.xlu0 8
  %202 = vperm.xlu0 %201, %v58
  %v203 = vpop.permute.xlu0 %202
  %v205 = vmul.f32 %v87, %v203
  %v206 = vmul.f32 %v88, %v203
  %v207 = vmul.f32 %v89, %v203
  %211 = vrot.lane.b32.xlu0 %v205, 96
  %v212 = vpop.permute.xlu0 %211
  %213 = vrot.lane.b32.xlu0 %v206, 96
  %v214 = vpop.permute.xlu0 %213
  %215 = vrot.lane.b32.xlu0 %v207, 96
  %v216 = vpop.permute.xlu0 %215
  %v217 = vsel %vm106, %v212, %v214
  %v218 = vsel %vm106, %v214, %v216
  %v222 = vadd.f32 %v198, %v212
  %v223 = vadd.f32 %v199, %v217
  %v224 = vadd.f32 %v200, %v218
  %v225 = vsel %vm51, 1, 0
  %v226 = vsel %vm52, 1, 0
  %vm227 = vcmp.eq.s32.totalorder %v225, 1
  %vm228 = vcmp.eq.s32.totalorder %v226, 1
  %232 = vrot.lane.b32.xlu0 %v167, 17
  %v233 = vpop.permute.xlu0 %232
  %234 = vrot.lane.b32.xlu0 %v168, 17
  %v235 = vpop.permute.xlu0 %234
  %236 = vrot.lane.b32.xlu0 %v169, 17
  %v237 = vpop.permute.xlu0 %236
  %vm238 = vcmask 138240
  %v239 = vsel %vm238, %v233, %v235
  %v240 = vsel %vm238, %v235, %v237
  %v243 = vsel %vm227, %v239, 0.0
  %v244 = vsel %vm228, %v240, 0.0
  %247 = vrot.lane.b32.xlu0 %v243, 112
  %v248 = vpop.permute.xlu0 %247
  %249 = vrot.lane.b32.xlu0 %v244, 112
  %v250 = vpop.permute.xlu0 %249
  %v251 = vsel %vm79, %v248, %v250
  %v255 = vadd.f32 %v112, %v248
  %v256 = vadd.f32 %v113, %v251
  %v257 = vadd.f32 %v114, %v250
  %v258 = vsel %vm53, 1, 0
  %v259 = vsel %vm54, 1, 0
  %vm260 = vcmp.eq.s32.totalorder %v258, 1
  %vm261 = vcmp.eq.s32.totalorder %v259, 1
  %265 = vrot.lane.b32.xlu0 %v222, 15
  %v266 = vpop.permute.xlu0 %265
  %267 = vrot.lane.b32.xlu0 %v223, 15
  %v268 = vpop.permute.xlu0 %267
  %269 = vrot.lane.b32.xlu0 %v224, 15
  %v270 = vpop.permute.xlu0 %269
  %vm271 = vcmask 121856
  %v272 = vsel %vm271, %v266, %v268
  %v273 = vsel %vm271, %v268, %v270
  %v276 = vsel %vm260, %v272, 0.0
  %v277 = vsel %vm261, %v273, 0.0
  %280 = vrot.lane.b32.xlu0 %v276, 112
  %v281 = vpop.permute.xlu0 %280
  %282 = vrot.lane.b32.xlu0 %v277, 112
  %v283 = vpop.permute.xlu0 %282
  %v284 = vsel %vm79, %v281, %v283
  %v288 = vadd.f32 %v255, %v281
  %v289 = vadd.f32 %v256, %v284
  %v290 = vadd.f32 %v257, %v283
  %291 = vset.pattern.permute.xlu0 9
  %292 = vperm.xlu0 %291, %v58
  %v293 = vpop.permute.xlu0 %292
  %v295 = vadd.f32 %v288, %v293
  %v296 = vadd.f32 %v289, %v293
  %v297 = vadd.f32 %v290, %v293
  %v298 = vmax.f32 %v295, 0.0
  %v299 = vmax.f32 %v296, 0.0
  %v300 = vmax.f32 %v297, 0.0
  %v301 = vld [vmem:[%s2] sm:$0xf]
  %303 = vset.pattern.permute.xlu0 8
  %304 = vperm.xlu0 %303, %v301
  %v305 = vpop.permute.xlu0 %304
  %310 = vrot.lane.b32.xlu0 %v298, 16
  %v311 = vpop.permute.xlu0 %310
  %312 = vrot.lane.b32.xlu0 %v299, 16
  %v313 = vpop.permute.xlu0 %312
  %314 = vrot.lane.b32.xlu0 %v300, 16
  %v315 = vpop.permute.xlu0 %314
  %vm316 = vcmask 130048
  %v317 = vsel %vm316, %v311, %v313
  %v318 = vsel %vm316, %v313, %v315
  %vm321 = vcmask 64512
  %v322 = vsel %vm321, %v301, 0
  %324 = vmatprep.subr.mxu0 0.0
  %325 = vmatpush1.msra.mxu0 0.0
  %326 = vmatprep.subr.mxu0 0.0
  %327 = vmatpush1.msra.mxu0 0.0
  %328 = vmatprep.subr.mxu0 0.0
  %329 = vmatpush1.msra.mxu0 0.0
  %330 = vmatprep.subr.mxu0 0.0
  %331 = vmatpush1.msra.mxu0 0.0
  %332 = vmatprep.subr.mxu0 0.0
  %333 = vmatpush1.msra.mxu0 0.0
  %334 = vmatprep.subr.mxu0 0.0
  %335 = vmatpush1.msra.mxu0 0.0
  %336 = vmatprep.subr.mxu0 0.0
  %337 = vmatpush1.msra.mxu0 0.0
  %338 = vmatprep.subr.mxu0 0.0
  %339 = vmatpush1.msra.mxu0 0.0
  %340 = vmatprep.subr.mxu0 0.0
  %341 = vmatpush1.msra.mxu0 0.0
  %342 = vmatprep.subr.mxu0 0.0
  %343 = vmatpush1.msra.mxu0 0.0
  %344 = vmatprep.subr.mxu0 0.0
  %345 = vmatpush1.msra.mxu0 0.0
  %346 = vmatprep.subr.mxu0 0.0
  %347 = vmatpush1.msra.mxu0 0.0
  %348 = vmatprep.subr.mxu0 0.0
  %349 = vmatpush1.msra.mxu0 0.0
  %350 = vmatprep.subr.mxu0 0.0
  %351 = vmatpush1.msra.mxu0 0.0
  %352 = vmatprep.subr.mxu0 0.0
  %353 = vmatpush1.msra.mxu0 0.0
  %354 = vmatprep.subr.mxu0 %v318
  %355 = vmatpush1.msra.mxu0 %v317
  %356 = vmatprep.subr.mxu0 0.0
  %357 = vmatpush2.msra.mxu0 0.0
  %358 = vmatprep.subr.mxu0 0.0
  %359 = vmatpush2.msra.mxu0 0.0
  %360 = vmatprep.subr.mxu0 0.0
  %361 = vmatpush2.msra.mxu0 0.0
  %362 = vmatprep.subr.mxu0 0.0
  %363 = vmatpush2.msra.mxu0 0.0
  %364 = vmatprep.subr.mxu0 0.0
  %365 = vmatpush2.msra.mxu0 0.0
  %366 = vmatprep.subr.mxu0 0.0
  %367 = vmatpush2.msra.mxu0 0.0
  %368 = vmatprep.subr.mxu0 0.0
  %369 = vmatpush2.msra.mxu0 0.0
  %370 = vmatprep.subr.mxu0 0.0
  %371 = vmatpush2.msra.mxu0 0.0
  %372 = vmatprep.subr.mxu0 0.0
  %373 = vmatpush2.msra.mxu0 0.0
  %374 = vmatprep.subr.mxu0 0.0
  %375 = vmatpush2.msra.mxu0 0.0
  %376 = vmatprep.subr.mxu0 0.0
  %377 = vmatpush2.msra.mxu0 0.0
  %378 = vmatprep.subr.mxu0 0.0
  %379 = vmatpush2.msra.mxu0 0.0
  %380 = vmatprep.subr.mxu0 0.0
  %381 = vmatpush2.msra.mxu0 0.0
  %382 = vmatprep.subr.mxu0 0.0
  %383 = vmatpush2.msra.mxu0 0.0
  %384 = vmatprep.subr.mxu0 0.0
  %385 = vmatpush2.msra.mxu0 0.0
  %386 = vmatprep.subr.mxu0 0.0
  %387 = vmatpush2.msra.mxu0 0.0
  %388 = vmatprep.mubr.f32.mxu0 0.0
  %389 = vmatmul.mubr.f32.gmra.mxu0 %v322
  %v390 = vpop.f32.mrf.mxu0
  %v391 = vadd.f32 %v305, %v390
  %v392 = vpop.f32.mrf.mxu0
  %v393 = vadd.f32 %v305, %v392
  %394 = vdwg.mxu0
  %v395 = vmax.f32 %v391, 0.0
  %v396 = vmax.f32 %v393, 0.0
  %v399 = vcombine.low %v395, %v396
  %401 = vst [vmem:[%s3] sm:$0xff] %v399
  // Predicated region
  $region18: #{channel_branch_pallas.1} parent=0 // pred_check
    _
  $region19: #{channel_branch_pallas.1} parent=0 // pred_check_branch
    %403 = sbr.rel (0) target = $region21
  $region20: #{channel_branch_pallas.1} parent=0 // pred_region
    _
  $region21: #{channel_branch_pallas.1} parent=0 // pred_fallthru
    _
  // Predicated region
  $region22: #{channel_branch_pallas.1} parent=0 // pred_check
    _
  $region23: #{channel_branch_pallas.1} parent=0 // pred_check_branch
    %405 = sbr.rel (0) target = $region25
  $region24: #{channel_branch_pallas.1} parent=0 // pred_region
    _
  $region25: #{channel_branch_pallas.1} parent=0 // pred_fallthru
    _

</llo_original>
